<compile_context>
chip_gen: v7x
topology: tpu7x:2x2x1
jax: 0.10.0
libtpu: 0.0.40
codegen_flags: <defaults>
</compile_context>

<pallas_src>
import functools

import jax
import jax.numpy as jnp
from jax.experimental import pallas as pl
from jax.experimental.pallas import tpu as pltpu

# Deterministic "config" values (configer.get('loss', 'focal_gamma') / ce_ignore_index).
GAMMA = 2.0
IGNORE_LABEL = -1.0
LANE = 128
ROW_ALIGN = 32        # sublane-tile multiple covering f32 / bf16 / int8 inputs


def _tpu_info():
    """Returns (physical VMEM bytes, tensorcores per chip) with conservative fallbacks."""
    vmem = None
    cores = 0
    try:
        info = pltpu.get_tpu_info()
        vmem = int(info.vmem_capacity_bytes)
        for attr in ("num_cores", "core_count", "num_tensorcores", "tensorcore_count"):
            v = getattr(info, attr, None)
            if v:
                cores = int(v)
                break
    except Exception:
        pass
    if vmem is None:
        vmem = 64 << 20        # v7x-sized floor: never over-allocates on any generation
    if cores <= 0:
        cores = 1
        try:
            kind = jax.devices()[0].device_kind.lower()
            if "7" in kind:    # v7x exposes 2 TensorCores per chip
                cores = 2
        except Exception:
            pass
    return vmem, cores


def _focal_loss_kernel(x_ref, t_ref, loss_ref, cnt_ref, *,
                       gamma, ignore_label, n_rows, tiles_per_part, tr, needs_mask):
    p = pl.program_id(0)     # partition (sharded across TensorCores when >1)
    jj = pl.program_id(1)    # streaming / reduction axis within the partition

    @pl.when(jj == 0)
    def _():
        loss_ref[...] = jnp.zeros_like(loss_ref)
        cnt_ref[...] = jnp.zeros_like(cnt_ref)

    x = x_ref[...].astype(jnp.float32)   # (K, TR, 128), cast from native dtype in-kernel
    t = t_ref[...].astype(jnp.float32)   # (K, TR, 128)

    valid_t = t != ignore_label          # lane-pad tail of t is padded with ignore_label

    def accumulate(valid):
        # pt uses the raw logits, exactly as the torch code does.
        pt = jnp.where(t == 1.0, x, 1.0 - x)
        # nn.BCEWithLogitsLoss(reduction='none'): max(x,0) - x*t + log1p(exp(-|x|))
        ce = jnp.maximum(x, 0.0) - x * t + jnp.log1p(jnp.exp(-jnp.abs(x)))
        one_minus_pt = 1.0 - pt
        if float(gamma) == int(gamma):
            focal_w = one_minus_pt ** int(gamma)   # exact for negative bases (torch.pow)
        else:
            # NOTE: non-integer gamma with negative (1-pt) -> NaN, faithful to torch.pow.
            focal_w = jnp.power(one_minus_pt, gamma)
        loss = jnp.where(valid, focal_w * ce, 0.0)  # select (not multiply): garbage/NaN-safe
        valid_f = valid.astype(jnp.float32)
        # Sublane (XLU) reduce to (K, 128) partials accumulated in the resident outputs.
        loss_ref[...] += jnp.sum(loss, axis=1)[None, :, :]
        cnt_ref[...] += jnp.sum(valid_f, axis=1)[None, :, :]

    if not needs_mask:
        # No partial blocks, no duplicate tiles: the ignore_label mask alone is sufficient.
        accumulate(valid_t)
    else:
        # Only the boundary block (r % tr != 0) and clamped duplicate tiles from an uneven
        # partition split need the row-index mask; full interior tiles take the cheap path.
        tile_idx = p * tiles_per_part + jj     # *intended* tile index (pre-clamp)
        base_row = tile_idx * tr               # int32: fine for segmentation-scale N
        is_full = (base_row + tr) <= n_rows

        @pl.when(is_full)
        def _():
            accumulate(valid_t)

        @pl.when(jnp.logical_not(is_full))
        def _():
            row = jax.lax.broadcasted_iota(jnp.int32, (tr, LANE), 0)
            in_range = (base_row + row) < n_rows          # (TR, 128)
            accumulate(in_range[None, :, :] & valid_t)


def focal_loss(inputs, targets, *, gamma=GAMMA, ignore_label=IGNORE_LABEL,
               target_step_bytes=None, num_partitions=None):
    """inputs: [K, ...] logits; targets: [K, ...] in {0, 1, ignore_label}. Returns scalar.

    Targets may be any narrow dtype (int8/bf16/f32) representing {0, 1, ignore_label};
    they are streamed in their native dtype and cast to f32 inside the kernel.
    """
    k = inputs.shape[0]
    n = 1
    for d in inputs.shape[1:]:
        n *= d

    # Reshapes only -- no dtype cast / data copy in the wrapper.
    x = inputs.reshape(k, n)
    t = targets.reshape(k, n)

    n_lanes = pl.cdiv(n, LANE) * LANE
    if n_lanes != n:
        # Only copy ever made: lane-align N so (K, R, 128) is a free reshape. Targets are
        # padded with ignore_label so the tail is excluded by the ordinary valid mask.
        x = jnp.pad(x, ((0, 0), (0, n_lanes - n)))
        t = jnp.pad(t, ((0, 0), (0, n_lanes - n)),
                    constant_values=t.dtype.type(ignore_label))
    r = n_lanes // LANE
    x3 = x.reshape(k, r, LANE)
    t3 = t.reshape(k, r, LANE)

    vmem_phys, cores = _tpu_info()

    # Block sizing: stream multi-MiB blocks so the ~0.35us per-grid-step overhead is
    # amortized (2-4+ MiB/step reaches ~85%+ of HBM roofline), capped so 2 inputs x 2
    # pipeline buffers stay within a generation-aware VMEM budget (64 MiB phys on v7x).
    bytes_per_row = k * LANE * (x3.dtype.itemsize + t3.dtype.itemsize)
    if target_step_bytes is None:
        target_step_bytes = min(6 << 20, vmem_phys // 10)
    tr = max(ROW_ALIGN, (int(target_step_bytes) // bytes_per_row) // ROW_ALIGN * ROW_ALIGN)
    if r <= tr:
        tr = r                      # full-dim block (allowed even when unaligned)
    num_blocks = pl.cdiv(r, tr)

    # Partition the block range across TensorCores only when the chip has more than one;
    # on single-TC chips (v5e/v6e) a split would only re-DMA clamped duplicate tiles.
    if num_partitions is None:
        num_partitions = cores
    parts = max(1, min(int(num_partitions), num_blocks))
    if parts > 1 and num_blocks % parts != 0 and num_blocks < 8 * parts:
        parts = 1                   # avoid duplicate-tile waste when blocks are few/large
    jt = pl.cdiv(num_blocks, parts)

    # Row-index masking only needed for a partial last block or clamped duplicate tiles.
    needs_mask = (num_blocks * tr != r) or (parts * jt != num_blocks)

    kernel = functools.partial(
        _focal_loss_kernel, gamma=gamma, ignore_label=float(ignore_label),
        n_rows=r, tiles_per_part=jt, tr=tr, needs_mask=needs_mask)

    def in_map(p, j):
        # Clamp so an uneven partition split never indexes past the array; the kernel's
        # row mask zeroes the contribution of any clamped (duplicate) tile.
        return (0, jnp.minimum(p * jt + j, num_blocks - 1), 0)

    step_bytes = k * tr * LANE * (x3.dtype.itemsize + t3.dtype.itemsize)
    vmem_limit = int(min(vmem_phys // 2, max(32 << 20, 4 * step_bytes + (4 << 20))))

    sem0 = pltpu.CORE_PARALLEL if (cores > 1 and parts > 1) else pltpu.PARALLEL

    cost = pl.CostEstimate(
        flops=12 * k * n,
        transcendentals=2 * k * n,
        bytes_accessed=k * n * (x3.dtype.itemsize + t3.dtype.itemsize)
        + 2 * parts * k * LANE * 4)

    out_loss, out_cnt = pl.pallas_call(
        kernel,
        out_shape=(jax.ShapeDtypeStruct((parts, k, LANE), jnp.float32),
                   jax.ShapeDtypeStruct((parts, k, LANE), jnp.float32)),
        grid_spec=pltpu.PrefetchScalarGridSpec(
            num_scalar_prefetch=0,
            grid=(parts, jt),
            in_specs=[pl.BlockSpec((k, tr, LANE), in_map),
                      pl.BlockSpec((k, tr, LANE), in_map)],
            out_specs=[pl.BlockSpec((1, k, LANE), lambda p, j: (p, 0, 0)),
                       pl.BlockSpec((1, k, LANE), lambda p, j: (p, 0, 0))]),
        compiler_params=pltpu.CompilerParams(
            dimension_semantics=(sem0, pltpu.ARBITRARY),
            vmem_limit_bytes=vmem_limit),
        cost_estimate=cost,
    )(x3, t3)

    # Tiny epilogue on (parts, K, 128) partials: combine partitions + lanes, then
    # per-sample mean over valid pixels and mean over K (matches the torch loop).
    loss_sum = jnp.sum(out_loss, axis=(0, 2))    # (K,)
    cnt = jnp.sum(out_cnt, axis=(0, 2))          # (K,)
    # NOTE: cnt[i] == 0 (no valid pixels) yields NaN, matching torch's mean of an empty tensor.
    return jnp.sum(loss_sum / cnt) / k


def focal_loss_ref(inputs, targets, gamma=GAMMA, ignore_label=IGNORE_LABEL):
    """Pure-JAX reference mirroring the PyTorch loop."""
    k = inputs.shape[0]
    total = 0.0
    for i in range(k):
        x = inputs[i].reshape(-1).astype(jnp.float32)
        t = targets[i].reshape(-1).astype(jnp.float32)
        m = (t != ignore_label)
        pt = jnp.where(t == 1.0, x, 1.0 - x)
        ce = jnp.maximum(x, 0.0) - x * t + jnp.log1p(jnp.exp(-jnp.abs(x)))
        if float(gamma) == int(gamma):
            w = (1.0 - pt) ** int(gamma)
        else:
            w = jnp.power(1.0 - pt, gamma)
        loss = w * ce
        total = total + jnp.sum(jnp.where(m, loss, 0.0)) / jnp.sum(m)
    return total / k


if __name__ == "__main__":
    key = jax.random.PRNGKey(0)

    def make_case(case_key, k, h, w, x_dtype, t_dtype):
        kx, kt, km = jax.random.split(case_key, 3)
        x = jax.random.normal(kx, (k, h, w), dtype=jnp.float32).astype(x_dtype)  # logits
        t = jax.random.bernoulli(kt, 0.5, (k, h, w)).astype(jnp.int32)           # {0,1}
        ign = jax.random.bernoulli(km, 0.1, (k, h, w))                           # ~10% ignored
        t = jnp.where(ign, -1, t).astype(t_dtype)
        return x, t

    keys = jax.random.split(key, 3)

    # Case 1: small, lane-aligned (16*16 = 256 pixels), single full-dim block, fast path.
    x1, t1 = make_case(keys[0], 2, 16, 16, jnp.float32, jnp.float32)
    o1 = focal_loss(x1, t1)
    jax.block_until_ready(o1)
    r1 = focal_loss_ref(x1, t1)
    assert jnp.allclose(o1, r1, atol=1e-4, rtol=1e-4), (o1, r1)

    # Case 2: ragged N (50*50 = 2500) -> lane padding handled purely by the ignore_label
    # pad of the targets (no per-element index mask needed).
    x2, t2 = make_case(keys[1], 3, 50, 50, jnp.float32, jnp.float32)
    o2 = focal_loss(x2, t2)
    jax.block_until_ready(o2)
    r2 = focal_loss_ref(x2, t2)
    assert jnp.allclose(o2, r2, atol=1e-4, rtol=1e-4), (o2, r2)

    # Case 3: bf16 logits + int8 targets (narrow HBM traffic), forced small blocks so the
    # grid has many tiles, plus a forced 2-way partition with an odd block count ->
    # exercises the clamped-duplicate tile and the pl.when partial-tile slow path.
    x3_, t3_ = make_case(keys[2], 2, 272, 256, jnp.bfloat16, jnp.int8)
    o3 = focal_loss(x3_, t3_, target_step_bytes=32 * 2 * LANE * 3, num_partitions=2)
    jax.block_until_ready(o3)
    r3 = focal_loss_ref(x3_, t3_)
    assert jnp.allclose(o3, r3, atol=1e-4, rtol=5e-4), (o3, r3)

    print("KERNEL_OK")
</pallas_src>

<mosaic_0001>
module attributes {stable_mosaic.version = 11 : i64} {
  func.func @_focal_loss_kernel(%arg0: i32, %arg1: i32, %arg2: memref<2x2x128xf32, #tpu.memory_space<vmem>>, %arg3: memref<2x2x128xf32, #tpu.memory_space<vmem>>, %arg4: memref<1x2x128xf32, #tpu.memory_space<vmem>>, %arg5: memref<1x2x128xf32, #tpu.memory_space<vmem>>) attributes {dimension_semantics = [#tpu.dimension_semantics<parallel>, #tpu.dimension_semantics<arbitrary>], iteration_bounds = array<i64: 1, 1>, scalar_prefetch = 0 : i64, scratch_operands = 0 : i64, tpu.core_type = #tpu.core_type<tc>, window_params = [{transform_indices = @transform_0, window_bounds = array<i64: 2, 2, 128>}, {transform_indices = @transform_1, window_bounds = array<i64: 2, 2, 128>}, {transform_indices = @transform_2, window_bounds = array<i64: 1, 2, 128>}, {transform_indices = @transform_3, window_bounds = array<i64: 1, 2, 128>}]} {
    %c0_i32 = arith.constant 0 : i32
    %0 = arith.cmpi eq, %arg1, %c0_i32 : i32
    %1 = arith.extui %0 : i1 to i32
    %c0_i32_0 = arith.constant 0 : i32
    %2 = arith.cmpi ne, %1, %c0_i32_0 : i32
    scf.if %2 {
      %cst_26 = arith.constant 0.000000e+00 : f32
      %40 = vector.broadcast %cst_26 : f32 to vector<1x2x128xf32>
      %c0_27 = arith.constant 0 : index
      %c0_28 = arith.constant 0 : index
      %c0_29 = arith.constant 0 : index
      %41 = vector.load %arg4[%c0_27, %c0_28, %c0_29] : memref<1x2x128xf32, #tpu.memory_space<vmem>>, vector<1x2x128xf32>
      tpu.vector_store %arg4[%c0_27, %c0_28, %c0_29], %40 {strides = array<i32>} : memref<1x2x128xf32, #tpu.memory_space<vmem>>, vector<1x2x128xf32>,
      %cst_30 = arith.constant 0.000000e+00 : f32
      %42 = vector.broadcast %cst_30 : f32 to vector<1x2x128xf32>
      %c0_31 = arith.constant 0 : index
      %c0_32 = arith.constant 0 : index
      %c0_33 = arith.constant 0 : index
      %43 = vector.load %arg5[%c0_31, %c0_32, %c0_33] : memref<1x2x128xf32, #tpu.memory_space<vmem>>, vector<1x2x128xf32>
      tpu.vector_store %arg5[%c0_31, %c0_32, %c0_33], %42 {strides = array<i32>} : memref<1x2x128xf32, #tpu.memory_space<vmem>>, vector<1x2x128xf32>,
    } else {
    }
    %c0 = arith.constant 0 : index
    %c0_1 = arith.constant 0 : index
    %c0_2 = arith.constant 0 : index
    %3 = vector.load %arg2[%c0, %c0_1, %c0_2] : memref<2x2x128xf32, #tpu.memory_space<vmem>>, vector<2x2x128xf32>
    %c0_3 = arith.constant 0 : index
    %c0_4 = arith.constant 0 : index
    %c0_5 = arith.constant 0 : index
    %4 = vector.load %arg3[%c0_3, %c0_4, %c0_5] : memref<2x2x128xf32, #tpu.memory_space<vmem>>, vector<2x2x128xf32>
    %cst = arith.constant -1.000000e+00 : f32
    %5 = vector.broadcast %cst : f32 to vector<2x2x128xf32>
    %6 = arith.cmpf one, %4, %5 : vector<2x2x128xf32>
    %cst_6 = arith.constant 1.000000e+00 : f32
    %7 = vector.broadcast %cst_6 : f32 to vector<2x2x128xf32>
    %8 = arith.cmpf oeq, %4, %7 : vector<2x2x128xf32>
    %cst_7 = arith.constant 1.000000e+00 : f32
    %9 = vector.broadcast %cst_7 : f32 to vector<2x2x128xf32>
    %10 = arith.subf %9, %3 : vector<2x2x128xf32>
    %11 = arith.select %8, %3, %10 : vector<2x2x128xi1>, vector<2x2x128xf32>
    %cst_8 = arith.constant 0.000000e+00 : f32
    %12 = vector.broadcast %cst_8 : f32 to vector<2x2x128xf32>
    %13 = arith.maximumf %3, %12 : vector<2x2x128xf32>
    %14 = arith.mulf %3, %4 : vector<2x2x128xf32>
    %15 = arith.subf %13, %14 : vector<2x2x128xf32>
    %16 = math.absf %3 : vector<2x2x128xf32>
    %cst_9 = arith.constant 0.000000e+00 : f32
    %17 = vector.broadcast %cst_9 : f32 to vector<2x2x128xf32>
    %18 = arith.subf %17, %16 : vector<2x2x128xf32>
    %19 = math.exp %18 : vector<2x2x128xf32>
    %20 = math.log1p %19 : vector<2x2x128xf32>
    %21 = arith.addf %15, %20 : vector<2x2x128xf32>
    %cst_10 = arith.constant 1.000000e+00 : f32
    %22 = vector.broadcast %cst_10 : f32 to vector<2x2x128xf32>
    %23 = arith.subf %22, %11 : vector<2x2x128xf32>
    %24 = arith.mulf %23, %23 : vector<2x2x128xf32>
    %25 = arith.mulf %24, %21 : vector<2x2x128xf32>
    %cst_11 = arith.constant 0.000000e+00 : f32
    %26 = vector.broadcast %cst_11 : f32 to vector<2x2x128xf32>
    %27 = arith.select %6, %25, %26 : vector<2x2x128xi1>, vector<2x2x128xf32>
    %28 = arith.extui %6 : vector<2x2x128xi1> to vector<2x2x128xi32>
    %29 = arith.sitofp %28 : vector<2x2x128xi32> to vector<2x2x128xf32>
    %c0_12 = arith.constant 0 : index
    %c0_13 = arith.constant 0 : index
    %c0_14 = arith.constant 0 : index
    %30 = vector.load %arg4[%c0_12, %c0_13, %c0_14] : memref<1x2x128xf32, #tpu.memory_space<vmem>>, vector<1x2x128xf32>
    %cst_15 = arith.constant dense<0.000000e+00> : vector<2x128xf32>
    %31 = vector.multi_reduction <add>, %27, %cst_15 [1] : vector<2x2x128xf32> to vector<2x128xf32>
    %32 = vector.shape_cast %31 : vector<2x128xf32> to vector<1x2x128xf32>
    %33 = arith.addf %30, %32 : vector<1x2x128xf32>
    %c0_16 = arith.constant 0 : index
    %c0_17 = arith.constant 0 : index
    %c0_18 = arith.constant 0 : index
    %34 = vector.load %arg4[%c0_16, %c0_17, %c0_18] : memref<1x2x128xf32, #tpu.memory_space<vmem>>, vector<1x2x128xf32>
    tpu.vector_store %arg4[%c0_16, %c0_17, %c0_18], %33 {strides = array<i32>} : memref<1x2x128xf32, #tpu.memory_space<vmem>>, vector<1x2x128xf32>,
    %c0_19 = arith.constant 0 : index
    %c0_20 = arith.constant 0 : index
    %c0_21 = arith.constant 0 : index
    %35 = vector.load %arg5[%c0_19, %c0_20, %c0_21] : memref<1x2x128xf32, #tpu.memory_space<vmem>>, vector<1x2x128xf32>
    %cst_22 = arith.constant dense<0.000000e+00> : vector<2x128xf32>
    %36 = vector.multi_reduction <add>, %29, %cst_22 [1] : vector<2x2x128xf32> to vector<2x128xf32>
    %37 = vector.shape_cast %36 : vector<2x128xf32> to vector<1x2x128xf32>
    %38 = arith.addf %35, %37 : vector<1x2x128xf32>
    %c0_23 = arith.constant 0 : index
    %c0_24 = arith.constant 0 : index
    %c0_25 = arith.constant 0 : index
    %39 = vector.load %arg5[%c0_23, %c0_24, %c0_25] : memref<1x2x128xf32, #tpu.memory_space<vmem>>, vector<1x2x128xf32>
    tpu.vector_store %arg5[%c0_23, %c0_24, %c0_25], %38 {strides = array<i32>} : memref<1x2x128xf32, #tpu.memory_space<vmem>>, vector<1x2x128xf32>,
    return
  }
  func.func @transform_0(%arg0: i32, %arg1: i32) -> (i32, i32, i32) {
    %c1_i32 = arith.constant 1 : i32
    %0 = arith.muli %arg0, %c1_i32 : i32
    %1 = arith.addi %0, %arg1 : i32
    %c0_i32 = arith.constant 0 : i32
    %2 = arith.minsi %1, %c0_i32 : i32
    %c0_i32_0 = arith.constant 0 : i32
    %c0_i32_1 = arith.constant 0 : i32
    %c0_i32_2 = arith.constant 0 : i32
    return %c0_i32_0, %2, %c0_i32_1 : i32, i32, i32
  }
  func.func @transform_1(%arg0: i32, %arg1: i32) -> (i32, i32, i32) {
    %c1_i32 = arith.constant 1 : i32
    %0 = arith.muli %arg0, %c1_i32 : i32
    %1 = arith.addi %0, %arg1 : i32
    %c0_i32 = arith.constant 0 : i32
    %2 = arith.minsi %1, %c0_i32 : i32
    %c0_i32_0 = arith.constant 0 : i32
    %c0_i32_1 = arith.constant 0 : i32
    %c0_i32_2 = arith.constant 0 : i32
    return %c0_i32_0, %2, %c0_i32_1 : i32, i32, i32
  }
  func.func @transform_2(%arg0: i32, %arg1: i32) -> (i32, i32, i32) {
    %c0_i32 = arith.constant 0 : i32
    %c0_i32_0 = arith.constant 0 : i32
    %c0_i32_1 = arith.constant 0 : i32
    return %arg0, %c0_i32, %c0_i32_0 : i32, i32, i32
  }
  func.func @transform_3(%arg0: i32, %arg1: i32) -> (i32, i32, i32) {
    %c0_i32 = arith.constant 0 : i32
    %c0_i32_0 = arith.constant 0 : i32
    %c0_i32_1 = arith.constant 0 : i32
    return %arg0, %c0_i32, %c0_i32_0 : i32, i32, i32
  }
}

</mosaic_0001>

<llo_original>
// kernel: tpu_custom_call.1
$region0: #{tpu_custom_call.1}
  #allocation0 [shape = 'u32[]', space=smem, size = 0x4, offset = 0x4, fixed_abs, tag = 'smem constant byte address 0x4 - core index']
  #allocation1 [shape = 'u32[144,128]{1,0:T(1,128)}', space=vmem, size = 0x12000, scoped, tag = 'internal scratch']
  %s0 = inlined_call_operand.hbm [shape: f32[2,2,128], index: 0, kind: input, shape index: {}]
  %s1 = inlined_call_operand.hbm [shape: f32[2,2,128], index: 1, kind: input, shape index: {}]
  %s2 = inlined_call_operand.hbm [shape: f32[1,2,128], index: 2, kind: output, shape index: {0}]
  %s3 = inlined_call_operand.hbm [shape: f32[1,2,128], index: 3, kind: output, shape index: {1}]
  %4 = xla_tuple %s2, %s3
  %s5 = sld [smem:[#allocation0]]
  $region38: #{tpu_custom_call.1} parent=0
    _
  %s7 = ssub.s32 1, %s5
  %s8 = scalar_select 0, %s7, %s5
  $region1: #{tpu_custom_call.1} parent=0
    #allocation2 [shape = 'u8[2048]{0}', space=vmem, size = 0x800, scoped, tag = 'input window, operand 0, single buffered']
    #allocation3 [shape = 's32[1]{0}', space=sflag, size = 0x4, scoped, tag = 'scoped memory for tpu_custom_call.1']
    #allocation4 [shape = 's32[1]{0}', space=sflag, size = 0x4, scoped, tag = 'scoped memory for tpu_custom_call.1']
    #allocation5 [shape = 'u8[2048]{0}', space=vmem, size = 0x800, scoped, tag = 'input window, operand 1, single buffered']
    #allocation6 [shape = 's32[1]{0}', space=sflag, size = 0x4, scoped, tag = 'scoped memory for tpu_custom_call.1']
    #allocation7 [shape = 'u8[1024]{0}', space=vmem, size = 0x400, scoped, tag = 'output window, operand 0, single buffered']
    #allocation8 [shape = 'u8[1024]{0}', space=vmem, size = 0x400, scoped, tag = 'output window, operand 1, single buffered']
    #allocation9 [shape = 's32[1]{0}', space=sflag, size = 0x4, scoped, tag = 'scoped memory for tpu_custom_call.1']
    %9 = vsyncpa [#allocation3], 0
    %10 = vsyncpa [#allocation6], 0
    %11 = vsyncpa [#allocation4], 0
    %12 = vsyncpa [#allocation9], 0
    // Predicated region
    $region2: #{tpu_custom_call.1} parent=1 // pred_check
      _
    $region3: #{tpu_custom_call.1} parent=1 // pred_check_branch
      %14 = sbr.rel (0) target = $region5
    $region4: #{tpu_custom_call.1} parent=1 // pred_region
      %s15 = sadd.s32 0, 0
      %p16 = scmp.lt.s32.totalorder %s15, 0
      %s17 = scalar_select %p16, %s15, 0
      %s19 = ssub.s32 64, 64
      %20 = vsyncadd [#allocation3], %s19
      %s21 = smul.addr %s17, 32
      %s22 = scalar_lea.hbm %s0, %s21
      %s23 = sshll.u32 [#allocation2], 4
      %s24 = int_to_ptr.vmem [resolvable:$true] %s23
      %29 = dma.hbm_to_vmem [thread:$0]  %s22, 64, %s24, [#allocation3], 32, 32, 2
    $region5: #{tpu_custom_call.1} parent=1 // pred_fallthru
      _
    // Predicated region
    $region6: #{tpu_custom_call.1} parent=1 // pred_check
      _
    $region7: #{tpu_custom_call.1} parent=1 // pred_check_branch
      %31 = sbr.rel (0) target = $region9
    $region8: #{tpu_custom_call.1} parent=1 // pred_region
      %s32 = sadd.s32 0, 0
      %p33 = scmp.lt.s32.totalorder %s32, 0
      %s34 = scalar_select %p33, %s32, 0
      %s36 = ssub.s32 64, 64
      %37 = vsyncadd [#allocation6], %s36
      %s38 = smul.addr %s34, 32
      %s39 = scalar_lea.hbm %s1, %s38
      %s40 = sshll.u32 [#allocation5], 4
      %s41 = int_to_ptr.vmem [resolvable:$true] %s40
      %46 = dma.hbm_to_vmem [thread:$0]  %s39, 64, %s41, [#allocation6], 32, 32, 2
    $region9: #{tpu_custom_call.1} parent=1 // pred_fallthru
      _
    // Predicated region
    $region10: #{tpu_custom_call.1} parent=1 // pred_check
      _
    $region11: #{tpu_custom_call.1} parent=1 // pred_check_branch
      %48 = sbr.rel (0) target = $region13
    $region12: #{tpu_custom_call.1} parent=1 // pred_region
      %49 = dma.done [#allocation3], 64
    $region13: #{tpu_custom_call.1} parent=1 // pred_fallthru
      _
    // Predicated region
    $region14: #{tpu_custom_call.1} parent=1 // pred_check
      _
    $region15: #{tpu_custom_call.1} parent=1 // pred_check_branch
      %51 = sbr.rel (0) target = $region17
    $region16: #{tpu_custom_call.1} parent=1 // pred_region
      %52 = dma.done [#allocation6], 64
    $region17: #{tpu_custom_call.1} parent=1 // pred_fallthru
      _
    %s53 = sadd.s32 0, 0
    %p54 = scmp.lt.s32.totalorder %s53, 0
    %s55 = scalar_select %p54, %s53, 0
    %s56 = sadd.s32 0, 0
    %p57 = scmp.lt.s32.totalorder %s56, 0
    %s58 = scalar_select %p57, %s56, 0
    %p59 = scmp.eq.s32.totalorder 0, 0
    // Predicated region
    $region18: #{tpu_custom_call.1} parent=1 // pred_check
      %p60 = pneg %p59
    $region19: #{tpu_custom_call.1} parent=1 // pred_check_branch
      %62 = sbr.rel (%p60) target = $region21
    $region20: #{tpu_custom_call.1} parent=1 // pred_region
      %63 = vst [vmem:[#allocation7] sm:$0x3] 0.0
      %64 = vst [vmem:[#allocation8] sm:$0x3] 0.0
    $region21: #{tpu_custom_call.1} parent=1 // pred_fallthru
      _
    %v65 = vld [vmem:[#allocation2] sm:$0x3]
    %v66 = vld [vmem:[#allocation2 + $0x2] sm:$0x3]
    %v67 = vld [vmem:[#allocation5] sm:$0x3]
    %v68 = vld [vmem:[#allocation5 + $0x2] sm:$0x3]
    %vm69 = vcmp.ne.f32.partialorder %v67, -1.0
    %vm70 = vcmp.ne.f32.partialorder %v68, -1.0
    %vm71 = vcmp.eq.f32.partialorder %v67, 1.0
    %vm72 = vcmp.eq.f32.partialorder %v68, 1.0
    %v73 = vsub.f32 1.0, %v65
    %v74 = vsub.f32 1.0, %v66
    %v75 = vsel %vm71, %v65, %v73
    %v76 = vsel %vm72, %v66, %v74
    %v77 = vmax.f32 %v65, 0.0
    %v78 = vmax.f32 %v66, 0.0
    %v79 = vmul.f32 %v65, %v67
    %v80 = vmul.f32 %v66, %v68
    %v81 = vsub.f32 %v77, %v79
    %v82 = vsub.f32 %v78, %v80
    %v83 = vand.u32 2147483647, %v65
    %v84 = vand.u32 2147483647, %v66
    %v85 = vsub.f32 0.0, %v83
    %v86 = vsub.f32 0.0, %v84
    %v87 = vmul.f32 %v85, 1.442695
    %v88 = vpow.pop %v87
    %v89 = vmul.f32 %v86, 1.442695
    %v90 = vpow.pop %v89
    %v91 = vadd.f32 %v88, 1.0
    %v92 = vlog2.pop %v91
    %v93 = vmul.f32 %v92, 0.6931472
    %v94 = vmul.f32 -0.5, %v88
    %v95 = vadd.f32 %v94, 1.0
    %v96 = vmul.f32 %v95, %v88
    %v97 = vand.u32 2147483647, %v88
    %vm98 = vcmp.lt.f32.partialorder %v97, 0.0004427343
    %v99 = vsel %vm98, %v96, %v93
    %v100 = vadd.f32 %v90, 1.0
    %v101 = vlog2.pop %v100
    %v102 = vmul.f32 %v101, 0.6931472
    %v103 = vmul.f32 -0.5, %v90
    %v104 = vadd.f32 %v103, 1.0
    %v105 = vmul.f32 %v104, %v90
    %v106 = vand.u32 2147483647, %v90
    %vm107 = vcmp.lt.f32.partialorder %v106, 0.0004427343
    %v108 = vsel %vm107, %v105, %v102
    %v109 = vadd.f32 %v81, %v99
    %v110 = vadd.f32 %v82, %v108
    %v111 = vsub.f32 1.0, %v75
    %v112 = vsub.f32 1.0, %v76
    %v113 = vmul.f32 %v111, %v111
    %v114 = vmul.f32 %v112, %v112
    %v115 = vmul.f32 %v113, %v109
    %v116 = vmul.f32 %v114, %v110
    %v117 = vsel %vm69, %v115, 0.0
    %v118 = vsel %vm70, %v116, 0.0
    %v119 = vsel %vm69, 1, 0
    %v120 = vsel %vm70, 1, 0
    %v121 = vcvt.s32.f32 %v119
    %v122 = vcvt.s32.f32 %v120
    %v123 = vld [vmem:[#allocation7] sm:$0x3]
    %vm124 = vcmask 1041408
    %v125 = vsel %vm124, %v117, 0.0
    %v126 = vrot.slane %v125, 4
    %v127 = vadd.f32 %v125, %v126
    %v128 = vrot.slane %v127, 2
    %v129 = vadd.f32 %v127, %v128
    %v130 = vrot.slane %v129, 1
    %v131 = vadd.f32 %v129, %v130
    %v132 = vsel %vm124, %v118, 0.0
    %v133 = vrot.slane %v132, 4
    %v134 = vadd.f32 %v132, %v133
    %v135 = vrot.slane %v134, 2
    %v136 = vadd.f32 %v134, %v135
    %v137 = vrot.slane %v136, 1
    %v138 = vadd.f32 %v136, %v137
    %vm141 = vcmask 1041409
    %v142 = vsel %vm141, %v138, %v131
    %v144 = vadd.f32 %v123, %v142
    %145 = vst [vmem:[#allocation7] sm:$0x3] %v144
    %v146 = vld [vmem:[#allocation8] sm:$0x3]
    %v147 = vsel %vm124, %v121, 0.0
    %v148 = vrot.slane %v147, 4
    %v149 = vadd.f32 %v147, %v148
    %v150 = vrot.slane %v149, 2
    %v151 = vadd.f32 %v149, %v150
    %v152 = vrot.slane %v151, 1
    %v153 = vadd.f32 %v151, %v152
    %v154 = vsel %vm124, %v122, 0.0
    %v155 = vrot.slane %v154, 4
    %v156 = vadd.f32 %v154, %v155
    %v157 = vrot.slane %v156, 2
    %v158 = vadd.f32 %v156, %v157
    %v159 = vrot.slane %v158, 1
    %v160 = vadd.f32 %v158, %v159
    %v163 = vsel %vm141, %v160, %v153
    %v165 = vadd.f32 %v146, %v163
    %166 = vst [vmem:[#allocation8] sm:$0x3] %v165
    // Predicated region
    $region22: #{tpu_custom_call.1} parent=1 // pred_check
      _
    $region23: #{tpu_custom_call.1} parent=1 // pred_check_branch
      %168 = sbr.rel (0) target = $region25
    $region24: #{tpu_custom_call.1} parent=1 // pred_region
      %s170 = ssub.s32 32, 32
      %171 = vsyncadd [#allocation4], %s170
      %s173 = sshll.u32 [#allocation7], 4
      %s174 = int_to_ptr.vmem [resolvable:$true] %s173
      %176 = dma.vmem_to_hbm [thread:$0]  %s174, 32, %s2, [#allocation4]
    $region25: #{tpu_custom_call.1} parent=1 // pred_fallthru
      _
    // Predicated region
    $region26: #{tpu_custom_call.1} parent=1 // pred_check
      _
    $region27: #{tpu_custom_call.1} parent=1 // pred_check_branch
      %178 = sbr.rel (0) target = $region29
    $region28: #{tpu_custom_call.1} parent=1 // pred_region
      %s180 = ssub.s32 32, 32
      %181 = vsyncadd [#allocation9], %s180
      %s183 = sshll.u32 [#allocation8], 4
      %s184 = int_to_ptr.vmem [resolvable:$true] %s183
      %186 = dma.vmem_to_hbm [thread:$0]  %s184, 32, %s3, [#allocation9]
    $region29: #{tpu_custom_call.1} parent=1 // pred_fallthru
      _
    // Predicated region
    $region30: #{tpu_custom_call.1} parent=1 // pred_check
      _
    $region31: #{tpu_custom_call.1} parent=1 // pred_check_branch
      %188 = sbr.rel (0) target = $region33
    $region32: #{tpu_custom_call.1} parent=1 // pred_region
      %189 = dma.done [#allocation4], 32
    $region33: #{tpu_custom_call.1} parent=1 // pred_fallthru
      _
    // Predicated region
    $region34: #{tpu_custom_call.1} parent=1 // pred_check
      _
    $region35: #{tpu_custom_call.1} parent=1 // pred_check_branch
      %191 = sbr.rel (0) target = $region37
    $region36: #{tpu_custom_call.1} parent=1 // pred_region
      %192 = dma.done [#allocation9], 32
    $region37: #{tpu_custom_call.1} parent=1 // pred_fallthru
      _
    %193 = vsyncpa [#allocation3], 1
    %194 = vsyncpa [#allocation6], 1
    %195 = vsyncpa [#allocation4], 1
    %196 = vsyncpa [#allocation9], 1

</llo_original>
